<compile_context>
chip_gen: v7x
topology: tpu7x:2x2x1
jax: 0.10.0
libtpu: 0.0.40
codegen_flags: <defaults>
</compile_context>

<pallas_src>
import functools

import jax
import jax.numpy as jnp
from jax.experimental import pallas as pl
from jax.experimental.pallas import tpu as pltpu

LANE = 128
SUBLANE = 8


def _round_up(n: int, m: int) -> int:
    return ((n + m - 1) // m) * m


def policy_net_kernel(x_ref, w1_ref, b1_ref, w2_ref, b2_ref, o_ref, *, action_dim):
    # x:  (TB, S)   w1: (S, Hp)   b1: (1, Hp)   w2: (Hp, Ap)   b2: (1, Ap)
    # o:  (TB, Ap)  -- Ap lanes beyond `action_dim` are padding.
    x = x_ref[...]

    # Linear 1 + ReLU (MXU matmul, f32 accumulation). Padded H lanes of w1/b1
    # are zero, so relu(0) = 0 and they contribute nothing downstream.
    h = jnp.dot(x, w1_ref[...], preferred_element_type=jnp.float32) + b1_ref[...]
    h = jnp.maximum(h, 0.0)

    # Linear 2 (padded H rows of w2 are zero).
    logits = jnp.dot(h, w2_ref[...], preferred_element_type=jnp.float32) + b2_ref[...]

    # Mask padded action lanes to -inf so they vanish from the softmax.
    lane_idx = jax.lax.broadcasted_iota(jnp.int32, logits.shape, dimension=1)
    logits = jnp.where(lane_idx < action_dim, logits, -jnp.inf)

    # Numerically stable softmax over the action dimension.
    m = jnp.max(logits, axis=-1, keepdims=True)
    e = jnp.exp(logits - m)                       # exp(-inf) = 0 on padded lanes
    denom = jnp.sum(e, axis=-1, keepdims=True)

    # Reciprocal on the (otherwise idle) EUP slot; one Newton step restores
    # full f32 precision at negligible VPU cost.
    inv = pl.reciprocal(denom, approx=True)
    inv = inv * (2.0 - denom * inv)

    o_ref[...] = (e * inv).astype(o_ref.dtype)


def policy_net_forward(x, w1, b1, w2, b2, *, tb: int = 128):
    """Forward pass matching PyTorch PolicyNet: softmax(relu(x@W1+b1)@W2+b2, dim=1).

    Weights are given as (in_dim, out_dim) (already transposed vs. nn.Linear).
    """
    B, S = x.shape
    H = w1.shape[1]
    A = w2.shape[1]

    # Lane-dense padded layout.
    H_pad = _round_up(H, LANE)
    A_pad = _round_up(A, LANE)
    tb = max(SUBLANE, _round_up(tb, SUBLANE))
    B_pad = _round_up(max(B, tb), tb)

    x_p = jnp.pad(x, ((0, B_pad - B), (0, 0)))
    w1_p = jnp.pad(w1, ((0, 0), (0, H_pad - H)))
    b1_p = jnp.pad(b1, ((0, 0), (0, H_pad - H)))
    w2_p = jnp.pad(w2, ((0, H_pad - H), (0, A_pad - A)))
    b2_p = jnp.pad(b2, ((0, 0), (0, A_pad - A)))

    grid = (B_pad // tb,)

    flops = 2 * B_pad * (S * H_pad + H_pad * A_pad)
    bytes_accessed = 4 * (
        B_pad * S + S * H_pad + H_pad + H_pad * A_pad + A_pad + B_pad * A_pad
    )
    cost = pl.CostEstimate(
        flops=flops,
        transcendentals=B_pad * A_pad,          # exp
        bytes_accessed=bytes_accessed,
    )

    kernel = functools.partial(policy_net_kernel, action_dim=A)

    out_padded = pl.pallas_call(
        kernel,
        out_shape=jax.ShapeDtypeStruct((B_pad, A_pad), jnp.float32),
        grid=grid,
        in_specs=[
            # x tiles stream along the batch grid axis.
            pl.BlockSpec((tb, S), lambda i: (i, 0)),
            # Weights / biases: constant index_map -> VMEM-resident across grid.
            pl.BlockSpec((S, H_pad), lambda i: (0, 0)),
            pl.BlockSpec((1, H_pad), lambda i: (0, 0)),
            pl.BlockSpec((H_pad, A_pad), lambda i: (0, 0)),
            pl.BlockSpec((1, A_pad), lambda i: (0, 0)),
        ],
        out_specs=pl.BlockSpec((tb, A_pad), lambda i: (i, 0)),
        compiler_params=pltpu.CompilerParams(
            dimension_semantics=("parallel",),   # megacore-shardable on v7x
        ),
        cost_estimate=cost,
    )(x_p, w1_p, b1_p, w2_p, b2_p)

    return out_padded[:B, :A]


def init_params(key, state_dim, hidden_dim, action_dim):
    """Deterministic init mimicking nn.Linear's U(-1/sqrt(fan_in), 1/sqrt(fan_in))."""
    k1, k2, k3, k4 = jax.random.split(key, 4)
    bound1 = 1.0 / jnp.sqrt(state_dim)
    bound2 = 1.0 / jnp.sqrt(hidden_dim)
    w1 = jax.random.uniform(k1, (state_dim, hidden_dim), jnp.float32, -bound1, bound1)
    b1 = jax.random.uniform(k2, (1, hidden_dim), jnp.float32, -bound1, bound1)
    w2 = jax.random.uniform(k3, (hidden_dim, action_dim), jnp.float32, -bound2, bound2)
    b2 = jax.random.uniform(k4, (1, action_dim), jnp.float32, -bound2, bound2)
    return w1, b1, w2, b2


if __name__ == "__main__":
    # Small shapes consistent with the module: batch=2, state_dim=4,
    # hidden_dim=32, action_dim=8.
    B, S, H, A = 2, 4, 32, 8
    key = jax.random.PRNGKey(0)
    kx, kp = jax.random.split(key)

    x = jax.random.normal(kx, (B, S), jnp.float32)
    w1, b1, w2, b2 = init_params(kp, S, H, A)

    out = policy_net_forward(x, w1, b1, w2, b2)
    out = jax.block_until_ready(out)

    # Sanity check against a plain-JAX reference of the same forward pass.
    h_ref = jnp.maximum(x @ w1 + b1, 0.0)
    logits_ref = h_ref @ w2 + b2
    ref = jax.nn.softmax(logits_ref, axis=1)
    assert out.shape == (B, A)
    assert jnp.allclose(out, ref, atol=1e-5, rtol=1e-5), jnp.max(jnp.abs(out - ref))
    assert jnp.allclose(jnp.sum(out, axis=1), jnp.ones((B,)), atol=1e-5)

    print("KERNEL_OK")
</pallas_src>

<mosaic_0001>
module attributes {stable_mosaic.version = 11 : i64} {
  func.func @policy_net_kernel(%arg0: i32, %arg1: memref<128x4xf32, #tpu.memory_space<vmem>>, %arg2: memref<4x128xf32, #tpu.memory_space<vmem>>, %arg3: memref<1x128xf32, #tpu.memory_space<vmem>>, %arg4: memref<128x128xf32, #tpu.memory_space<vmem>>, %arg5: memref<1x128xf32, #tpu.memory_space<vmem>>, %arg6: memref<128x128xf32, #tpu.memory_space<vmem>>) attributes {dimension_semantics = [#tpu.dimension_semantics<parallel>], iteration_bounds = array<i64: 1>, scalar_prefetch = 0 : i64, scratch_operands = 0 : i64, tpu.core_type = #tpu.core_type<tc>, window_params = [{transform_indices = @transform_0, window_bounds = array<i64: 128, 4>}, {pipeline_mode = #tpu.pipeline_mode<synchronous>, transform_indices = @transform_1, window_bounds = array<i64: 4, 128>}, {pipeline_mode = #tpu.pipeline_mode<synchronous>, transform_indices = @transform_2, window_bounds = array<i64: 1, 128>}, {pipeline_mode = #tpu.pipeline_mode<synchronous>, transform_indices = @transform_3, window_bounds = array<i64: 128, 128>}, {pipeline_mode = #tpu.pipeline_mode<synchronous>, transform_indices = @transform_4, window_bounds = array<i64: 1, 128>}, {transform_indices = @transform_5, window_bounds = array<i64: 128, 128>}]} {
    %c0 = arith.constant 0 : index
    %c0_0 = arith.constant 0 : index
    %0 = vector.load %arg1[%c0, %c0_0] : memref<128x4xf32, #tpu.memory_space<vmem>>, vector<128x4xf32>
    %c0_1 = arith.constant 0 : index
    %c0_2 = arith.constant 0 : index
    %1 = vector.load %arg2[%c0_1, %c0_2] : memref<4x128xf32, #tpu.memory_space<vmem>>, vector<4x128xf32>
    %cst = arith.constant dense<0.000000e+00> : vector<128x128xf32>
    %2 = tpu.matmul %0, %1, %cst {dimension_numbers = #tpu.dot_dimension_numbers<[1], [0], [0], [1], [0, 0, 1, 1], [], []>} : vector<128x4xf32>, vector<4x128xf32>, vector<128x128xf32> -> vector<128x128xf32>
    %c0_3 = arith.constant 0 : index
    %c0_4 = arith.constant 0 : index
    %3 = vector.load %arg3[%c0_3, %c0_4] : memref<1x128xf32, #tpu.memory_space<vmem>>, vector<1x128xf32>
    %4 = vector.broadcast %3 : vector<1x128xf32> to vector<128x128xf32>
    %5 = arith.addf %2, %4 : vector<128x128xf32>
    %cst_5 = arith.constant 0.000000e+00 : f32
    %6 = vector.broadcast %cst_5 : f32 to vector<128x128xf32>
    %7 = arith.maximumf %5, %6 : vector<128x128xf32>
    %c0_6 = arith.constant 0 : index
    %c0_7 = arith.constant 0 : index
    %8 = vector.load %arg4[%c0_6, %c0_7] : memref<128x128xf32, #tpu.memory_space<vmem>>, vector<128x128xf32>
    %cst_8 = arith.constant dense<0.000000e+00> : vector<128x128xf32>
    %9 = tpu.matmul %7, %8, %cst_8 {dimension_numbers = #tpu.dot_dimension_numbers<[1], [0], [0], [1], [0, 0, 1, 1], [], []>} : vector<128x128xf32>, vector<128x128xf32>, vector<128x128xf32> -> vector<128x128xf32>
    %c0_9 = arith.constant 0 : index
    %c0_10 = arith.constant 0 : index
    %10 = vector.load %arg5[%c0_9, %c0_10] : memref<1x128xf32, #tpu.memory_space<vmem>>, vector<1x128xf32>
    %11 = vector.broadcast %10 : vector<1x128xf32> to vector<128x128xf32>
    %12 = arith.addf %9, %11 : vector<128x128xf32>
    %13 = tpu.iota {dimensions = array<i32: 1>} : vector<128x128xi32>
    %c8_i32 = arith.constant 8 : i32
    %14 = vector.broadcast %c8_i32 : i32 to vector<128x128xi32>
    %15 = arith.cmpi slt, %13, %14 : vector<128x128xi32>
    %cst_11 = arith.constant 0xFF800000 : f32
    %16 = vector.broadcast %cst_11 : f32 to vector<128x128xf32>
    %17 = arith.select %15, %12, %16 : vector<128x128xi1>, vector<128x128xf32>
    %cst_12 = arith.constant dense<0xFF800000> : vector<128xf32>
    %18 = vector.multi_reduction <maximumf>, %17, %cst_12 [1] : vector<128x128xf32> to vector<128xf32>
    %19 = vector.shape_cast %18 : vector<128xf32> to vector<128x1xf32>
    %20 = vector.broadcast %19 : vector<128x1xf32> to vector<128x128xf32>
    %21 = arith.subf %17, %20 : vector<128x128xf32>
    %22 = math.exp %21 : vector<128x128xf32>
    %cst_13 = arith.constant dense<0.000000e+00> : vector<128xf32>
    %23 = vector.multi_reduction <add>, %22, %cst_13 [1] : vector<128x128xf32> to vector<128xf32>
    %24 = vector.shape_cast %23 : vector<128xf32> to vector<128x1xf32>
    %25 = tpu.reciprocal %24 {approx = true} : vector<128x1xf32> -> vector<128x1xf32>
    %26 = arith.mulf %24, %25 : vector<128x1xf32>
    %cst_14 = arith.constant 2.000000e+00 : f32
    %27 = vector.broadcast %cst_14 : f32 to vector<128x1xf32>
    %28 = arith.subf %27, %26 : vector<128x1xf32>
    %29 = arith.mulf %25, %28 : vector<128x1xf32>
    %30 = vector.broadcast %29 : vector<128x1xf32> to vector<128x128xf32>
    %31 = arith.mulf %22, %30 : vector<128x128xf32>
    %c0_15 = arith.constant 0 : index
    %c0_16 = arith.constant 0 : index
    %32 = vector.load %arg6[%c0_15, %c0_16] : memref<128x128xf32, #tpu.memory_space<vmem>>, vector<128x128xf32>
    tpu.vector_store %arg6[%c0_15, %c0_16], %31 {strides = array<i32>} : memref<128x128xf32, #tpu.memory_space<vmem>>, vector<128x128xf32>,
    return
  }
  func.func @transform_0(%arg0: i32) -> (i32, i32) {
    %c0_i32 = arith.constant 0 : i32
    %c0_i32_0 = arith.constant 0 : i32
    return %arg0, %c0_i32 : i32, i32
  }
  func.func @transform_1(%arg0: i32) -> (i32, i32) {
    %c0_i32 = arith.constant 0 : i32
    %c0_i32_0 = arith.constant 0 : i32
    %c0_i32_1 = arith.constant 0 : i32
    return %c0_i32, %c0_i32_0 : i32, i32
  }
  func.func @transform_2(%arg0: i32) -> (i32, i32) {
    %c0_i32 = arith.constant 0 : i32
    %c0_i32_0 = arith.constant 0 : i32
    %c0_i32_1 = arith.constant 0 : i32
    return %c0_i32, %c0_i32_0 : i32, i32
  }
  func.func @transform_3(%arg0: i32) -> (i32, i32) {
    %c0_i32 = arith.constant 0 : i32
    %c0_i32_0 = arith.constant 0 : i32
    %c0_i32_1 = arith.constant 0 : i32
    return %c0_i32, %c0_i32_0 : i32, i32
  }
  func.func @transform_4(%arg0: i32) -> (i32, i32) {
    %c0_i32 = arith.constant 0 : i32
    %c0_i32_0 = arith.constant 0 : i32
    %c0_i32_1 = arith.constant 0 : i32
    return %c0_i32, %c0_i32_0 : i32, i32
  }
  func.func @transform_5(%arg0: i32) -> (i32, i32) {
    %c0_i32 = arith.constant 0 : i32
    %c0_i32_0 = arith.constant 0 : i32
    return %arg0, %c0_i32 : i32, i32
  }
}

</mosaic_0001>

<llo_original>
// kernel: tpu_custom_call.1
$region0: #{tpu_custom_call.1}
  #allocation0 [shape = 'u32[]', space=smem, size = 0x4, offset = 0x4, fixed_abs, tag = 'smem constant byte address 0x4 - core index']
  #allocation1 [shape = 'u32[144,128]{1,0:T(1,128)}', space=vmem, size = 0x12000, scoped, tag = 'internal scratch']
  %s0 = inlined_call_operand.vmem [shape: f32[128,4], index: 0, kind: input, shape index: {}]
  %s1 = inlined_call_operand.vmem [shape: f32[4,128], index: 1, kind: input, shape index: {}]
  %s2 = inlined_call_operand.vmem [shape: f32[1,128], index: 2, kind: input, shape index: {}]
  %s3 = inlined_call_operand.vmem [shape: f32[128,128], index: 3, kind: input, shape index: {}]
  %s4 = inlined_call_operand.vmem [shape: f32[1,128], index: 4, kind: input, shape index: {}]
  %s5 = inlined_call_operand.hbm [shape: f32[128,128], index: 5, kind: output, shape index: {}]
  %s6 = sld [smem:[#allocation0]]
  $region30: #{tpu_custom_call.1} parent=0
    _
  %s8 = ssub.s32 1, %s6
  %s9 = scalar_select 0, %s8, %s6
  $region1: #{tpu_custom_call.1} parent=0
    #allocation2 [shape = 'u8[65536]{0}', space=vmem, size = 0x10000, scoped, tag = 'output window, operand 0, single buffered']
    #allocation3 [shape = 's32[1]{0}', space=sflag, size = 0x4, scoped, tag = 'scoped memory for tpu_custom_call.1']
    %10 = vsyncpa [#allocation3], 0
    // Predicated region
    $region2: #{tpu_custom_call.1} parent=1 // pred_check
      _
    $region3: #{tpu_custom_call.1} parent=1 // pred_check_branch
      %12 = sbr.rel (0) target = $region5
    $region4: #{tpu_custom_call.1} parent=1 // pred_region
      _
    $region5: #{tpu_custom_call.1} parent=1 // pred_fallthru
      _
    // Predicated region
    $region6: #{tpu_custom_call.1} parent=1 // pred_check
      _
    $region7: #{tpu_custom_call.1} parent=1 // pred_check_branch
      %14 = sbr.rel (0) target = $region9
    $region8: #{tpu_custom_call.1} parent=1 // pred_region
      _
    $region9: #{tpu_custom_call.1} parent=1 // pred_fallthru
      _
    // Predicated region
    $region10: #{tpu_custom_call.1} parent=1 // pred_check
      _
    $region11: #{tpu_custom_call.1} parent=1 // pred_check_branch
      %16 = sbr.rel (0) target = $region13
    $region12: #{tpu_custom_call.1} parent=1 // pred_region
      _
    $region13: #{tpu_custom_call.1} parent=1 // pred_fallthru
      _
    // Predicated region
    $region14: #{tpu_custom_call.1} parent=1 // pred_check
      _
    $region15: #{tpu_custom_call.1} parent=1 // pred_check_branch
      %18 = sbr.rel (0) target = $region17
    $region16: #{tpu_custom_call.1} parent=1 // pred_region
      _
    $region17: #{tpu_custom_call.1} parent=1 // pred_fallthru
      _
    // Predicated region
    $region18: #{tpu_custom_call.1} parent=1 // pred_check
      _
    $region19: #{tpu_custom_call.1} parent=1 // pred_check_branch
      %20 = sbr.rel (0) target = $region21
    $region20: #{tpu_custom_call.1} parent=1 // pred_region
      _
    $region21: #{tpu_custom_call.1} parent=1 // pred_fallthru
      _
    %v21 = vld [vmem:[%s0] sm:$0xff]
    %v22 = vld [vmem:[%s0 + $0x8] sm:$0xff]
    %v23 = vld [vmem:[%s0 + $0x10] sm:$0xff]
    %v24 = vld [vmem:[%s0 + $0x18] sm:$0xff]
    %v25 = vld [vmem:[%s0 + $0x20] sm:$0xff]
    %v26 = vld [vmem:[%s0 + $0x28] sm:$0xff]
    %v27 = vld [vmem:[%s0 + $0x30] sm:$0xff]
    %v28 = vld [vmem:[%s0 + $0x38] sm:$0xff]
    %v29 = vld [vmem:[%s0 + $0x40] sm:$0xff]
    %v30 = vld [vmem:[%s0 + $0x48] sm:$0xff]
    %v31 = vld [vmem:[%s0 + $0x50] sm:$0xff]
    %v32 = vld [vmem:[%s0 + $0x58] sm:$0xff]
    %v33 = vld [vmem:[%s0 + $0x60] sm:$0xff]
    %v34 = vld [vmem:[%s0 + $0x68] sm:$0xff]
    %v35 = vld [vmem:[%s0 + $0x70] sm:$0xff]
    %v36 = vld [vmem:[%s0 + $0x78] sm:$0xff]
    %v37 = vld [vmem:[%s1] sm:$0xf]
    %v38 = vld [vmem:[%s2] sm:$0x1]
    %v40 = vlaneseq
    %v41 = vshrl.u32 %v40, 7
    %v42 = vsub.s32 0, %v41
    %v43 = vrot.slane %v38, %v42
    %vm45 = vcmask 31744
    %v47 = vsel %vm45, %v21, 0
    %v50 = vsel %vm45, %v22, 0
    %v53 = vsel %vm45, %v23, 0
    %v56 = vsel %vm45, %v24, 0
    %v59 = vsel %vm45, %v25, 0
    %v62 = vsel %vm45, %v26, 0
    %v65 = vsel %vm45, %v27, 0
    %v68 = vsel %vm45, %v28, 0
    %v71 = vsel %vm45, %v29, 0
    %v74 = vsel %vm45, %v30, 0
    %v77 = vsel %vm45, %v31, 0
    %v80 = vsel %vm45, %v32, 0
    %v83 = vsel %vm45, %v33, 0
    %v86 = vsel %vm45, %v34, 0
    %v89 = vsel %vm45, %v35, 0
    %v92 = vsel %vm45, %v36, 0
    %vm94 = vcmask 1043456
    %v96 = vsel %vm94, %v37, 0
    %98 = vmatprep.subr.mxu0 0.0
    %99 = vmatpush1.msra.mxu0 %v96
    %100 = vmatprep.subr.mxu0 0.0
    %101 = vmatpush1.msra.mxu0 0.0
    %102 = vmatprep.subr.mxu0 0.0
    %103 = vmatpush1.msra.mxu0 0.0
    %104 = vmatprep.subr.mxu0 0.0
    %105 = vmatpush1.msra.mxu0 0.0
    %106 = vmatprep.subr.mxu0 0.0
    %107 = vmatpush1.msra.mxu0 0.0
    %108 = vmatprep.subr.mxu0 0.0
    %109 = vmatpush1.msra.mxu0 0.0
    %110 = vmatprep.subr.mxu0 0.0
    %111 = vmatpush1.msra.mxu0 0.0
    %112 = vmatprep.subr.mxu0 0.0
    %113 = vmatpush1.msra.mxu0 0.0
    %114 = vmatprep.subr.mxu0 0.0
    %115 = vmatpush1.msra.mxu0 0.0
    %116 = vmatprep.subr.mxu0 0.0
    %117 = vmatpush1.msra.mxu0 0.0
    %118 = vmatprep.subr.mxu0 0.0
    %119 = vmatpush1.msra.mxu0 0.0
    %120 = vmatprep.subr.mxu0 0.0
    %121 = vmatpush1.msra.mxu0 0.0
    %122 = vmatprep.subr.mxu0 0.0
    %123 = vmatpush1.msra.mxu0 0.0
    %124 = vmatprep.subr.mxu0 0.0
    %125 = vmatpush1.msra.mxu0 0.0
    %126 = vmatprep.subr.mxu0 0.0
    %127 = vmatpush1.msra.mxu0 0.0
    %128 = vmatprep.subr.mxu0 0.0
    %129 = vmatpush1.msra.mxu0 0.0
    %130 = vmatprep.subr.mxu0 0.0
    %131 = vmatpush1.msra.mxu0 0.0
    %132 = vmatprep.subr.mxu0 0.0
    %133 = vmatpush1.msra.mxu0 0.0
    %134 = vmatprep.subr.mxu0 0.0
    %135 = vmatpush1.msra.mxu0 0.0
    %136 = vmatprep.subr.mxu0 0.0
    %137 = vmatpush1.msra.mxu0 0.0
    %138 = vmatprep.subr.mxu0 0.0
    %139 = vmatpush1.msra.mxu0 0.0
    %140 = vmatprep.subr.mxu0 0.0
    %141 = vmatpush1.msra.mxu0 0.0
    %142 = vmatprep.subr.mxu0 0.0
    %143 = vmatpush1.msra.mxu0 0.0
    %144 = vmatprep.subr.mxu0 0.0
    %145 = vmatpush1.msra.mxu0 0.0
    %146 = vmatprep.subr.mxu0 0.0
    %147 = vmatpush1.msra.mxu0 0.0
    %148 = vmatprep.subr.mxu0 0.0
    %149 = vmatpush1.msra.mxu0 0.0
    %150 = vmatprep.subr.mxu0 0.0
    %151 = vmatpush1.msra.mxu0 0.0
    %152 = vmatprep.subr.mxu0 0.0
    %153 = vmatpush1.msra.mxu0 0.0
    %154 = vmatprep.subr.mxu0 0.0
    %155 = vmatpush1.msra.mxu0 0.0
    %156 = vmatprep.subr.mxu0 0.0
    %157 = vmatpush1.msra.mxu0 0.0
    %158 = vmatprep.subr.mxu0 0.0
    %159 = vmatpush1.msra.mxu0 0.0
    %160 = vmatprep.subr.mxu0 0.0
    %161 = vmatpush1.msra.mxu0 0.0
    %162 = vmatprep.mubr.f32.mxu0 0.0
    %163 = vmatmul.mubr.f32.gmra.mrb[0].mxu0 %v47
    %v164 = vpop.f32.mrb[0].mxu0
    %v165 = vadd.f32 %v43, %v164
    %v166 = vpop.f32.mrb[0].mxu0
    %167 = vmatprep.mubr.f32.mxu0 0.0
    %168 = vmatmul.mubr.f32.gmra.mrb[0].mxu0 %v50
    %v169 = vpop.f32.mrb[0].mxu0
    %v170 = vadd.f32 %v43, %v169
    %v171 = vpop.f32.mrb[0].mxu0
    %172 = vmatprep.mubr.f32.mxu0 0.0
    %173 = vmatmul.mubr.f32.gmra.mrb[0].mxu0 %v53
    %v174 = vpop.f32.mrb[0].mxu0
    %v175 = vadd.f32 %v43, %v174
    %v176 = vpop.f32.mrb[0].mxu0
    %177 = vmatprep.mubr.f32.mxu0 0.0
    %178 = vmatmul.mubr.f32.gmra.mrb[0].mxu0 %v56
    %v179 = vpop.f32.mrb[0].mxu0
    %v180 = vadd.f32 %v43, %v179
    %v181 = vpop.f32.mrb[0].mxu0
    %182 = vmatprep.mubr.f32.mxu0 0.0
    %183 = vmatmul.mubr.f32.gmra.mrb[0].mxu0 %v59
    %v184 = vpop.f32.mrb[0].mxu0
    %v185 = vadd.f32 %v43, %v184
    %v186 = vpop.f32.mrb[0].mxu0
    %187 = vmatprep.mubr.f32.mxu0 0.0
    %188 = vmatmul.mubr.f32.gmra.mrb[0].mxu0 %v62
    %v189 = vpop.f32.mrb[0].mxu0
    %v190 = vadd.f32 %v43, %v189
    %v191 = vpop.f32.mrb[0].mxu0
    %192 = vmatprep.mubr.f32.mxu0 0.0
    %193 = vmatmul.mubr.f32.gmra.mrb[0].mxu0 %v65
    %v194 = vpop.f32.mrb[0].mxu0
    %v195 = vadd.f32 %v43, %v194
    %v196 = vpop.f32.mrb[0].mxu0
    %197 = vmatprep.mubr.f32.mxu0 0.0
    %198 = vmatmul.mubr.f32.gmra.mrb[0].mxu0 %v68
    %v199 = vpop.f32.mrb[0].mxu0
    %v200 = vadd.f32 %v43, %v199
    %v201 = vpop.f32.mrb[0].mxu0
    %202 = vmatprep.mubr.f32.mxu0 0.0
    %203 = vmatmul.mubr.f32.gmra.mrb[0].mxu0 %v71
    %v204 = vpop.f32.mrb[0].mxu0
    %v205 = vadd.f32 %v43, %v204
    %v206 = vpop.f32.mrb[0].mxu0
    %207 = vmatprep.mubr.f32.mxu0 0.0
    %208 = vmatmul.mubr.f32.gmra.mrb[0].mxu0 %v74
    %v209 = vpop.f32.mrb[0].mxu0
    %v210 = vadd.f32 %v43, %v209
    %v211 = vpop.f32.mrb[0].mxu0
    %212 = vmatprep.mubr.f32.mxu0 0.0
    %213 = vmatmul.mubr.f32.gmra.mrb[0].mxu0 %v77
    %v214 = vpop.f32.mrb[0].mxu0
    %v215 = vadd.f32 %v43, %v214
    %v216 = vpop.f32.mrb[0].mxu0
    %217 = vmatprep.mubr.f32.mxu0 0.0
    %218 = vmatmul.mubr.f32.gmra.mrb[0].mxu0 %v80
    %v219 = vpop.f32.mrb[0].mxu0
    %v220 = vadd.f32 %v43, %v219
    %v221 = vpop.f32.mrb[0].mxu0
    %222 = vmatprep.mubr.f32.mxu0 0.0
    %223 = vmatmul.mubr.f32.gmra.mrb[0].mxu0 %v83
    %v224 = vpop.f32.mrb[0].mxu0
    %v225 = vadd.f32 %v43, %v224
    %v226 = vpop.f32.mrb[0].mxu0
    %227 = vmatprep.mubr.f32.mxu0 0.0
    %228 = vmatmul.mubr.f32.gmra.mrb[0].mxu0 %v86
    %v229 = vpop.f32.mrb[0].mxu0
    %v230 = vadd.f32 %v43, %v229
    %v231 = vpop.f32.mrb[0].mxu0
    %232 = vmatprep.mubr.f32.mxu0 0.0
    %233 = vmatmul.mubr.f32.gmra.mrb[0].mxu0 %v89
    %v234 = vpop.f32.mrb[0].mxu0
    %v235 = vadd.f32 %v43, %v234
    %v236 = vpop.f32.mrb[0].mxu0
    %237 = vmatprep.mubr.f32.mxu0 0.0
    %238 = vmatmul.mubr.f32.gmra.mrb[0].mxu0 %v92
    %v239 = vpop.f32.mrb[0].mxu0
    %v240 = vadd.f32 %v43, %v239
    %v241 = vpop.f32.mrb[0].mxu0
    %242 = vdwg.mxu0
    %v243 = vmax.f32 %v165, 0.0
    %v244 = vmax.f32 %v170, 0.0
    %v245 = vmax.f32 %v175, 0.0
    %v246 = vmax.f32 %v180, 0.0
    %v247 = vmax.f32 %v185, 0.0
    %v248 = vmax.f32 %v190, 0.0
    %v249 = vmax.f32 %v195, 0.0
    %v250 = vmax.f32 %v200, 0.0
    %v251 = vmax.f32 %v205, 0.0
    %v252 = vmax.f32 %v210, 0.0
    %v253 = vmax.f32 %v215, 0.0
    %v254 = vmax.f32 %v220, 0.0
    %v255 = vmax.f32 %v225, 0.0
    %v256 = vmax.f32 %v230, 0.0
    %v257 = vmax.f32 %v235, 0.0
    %v258 = vmax.f32 %v240, 0.0
    %v259 = vld [vmem:[%s3] sm:$0xff]
    %v260 = vld [vmem:[%s3 + $0x8] sm:$0xff]
    %v261 = vld [vmem:[%s3 + $0x10] sm:$0xff]
    %v262 = vld [vmem:[%s3 + $0x18] sm:$0xff]
    %v263 = vld [vmem:[%s3 + $0x20] sm:$0xff]
    %v264 = vld [vmem:[%s3 + $0x28] sm:$0xff]
    %v265 = vld [vmem:[%s3 + $0x30] sm:$0xff]
    %v266 = vld [vmem:[%s3 + $0x38] sm:$0xff]
    %v267 = vld [vmem:[%s3 + $0x40] sm:$0xff]
    %v268 = vld [vmem:[%s3 + $0x48] sm:$0xff]
    %v269 = vld [vmem:[%s3 + $0x50] sm:$0xff]
    %v270 = vld [vmem:[%s3 + $0x58] sm:$0xff]
    %v271 = vld [vmem:[%s3 + $0x60] sm:$0xff]
    %v272 = vld [vmem:[%s3 + $0x68] sm:$0xff]
    %v273 = vld [vmem:[%s3 + $0x70] sm:$0xff]
    %v274 = vld [vmem:[%s3 + $0x78] sm:$0xff]
    %v275 = vld [vmem:[%s4] sm:$0x1]
    %v277 = vlaneseq
    %v278 = vshrl.u32 %v277, 7
    %v279 = vsub.s32 0, %v278
    %v280 = vrot.slane %v275, %v279
    %282 = vmatprep.subr.mxu0 0.0
    %283 = vmatpush1.msra.mxu0 %v259
    %284 = vmatprep.subr.mxu0 0.0
    %285 = vmatpush1.msra.mxu0 %v260
    %286 = vmatprep.subr.mxu0 0.0
    %287 = vmatpush1.msra.mxu0 %v261
    %288 = vmatprep.subr.mxu0 0.0
    %289 = vmatpush1.msra.mxu0 %v262
    %290 = vmatprep.subr.mxu0 0.0
    %291 = vmatpush1.msra.mxu0 %v263
    %292 = vmatprep.subr.mxu0 0.0
    %293 = vmatpush1.msra.mxu0 %v264
    %294 = vmatprep.subr.mxu0 0.0
    %295 = vmatpush1.msra.mxu0 %v265
    %296 = vmatprep.subr.mxu0 0.0
    %297 = vmatpush1.msra.mxu0 %v266
    %298 = vmatprep.subr.mxu0 0.0
    %299 = vmatpush1.msra.mxu0 %v267
    %300 = vmatprep.subr.mxu0 0.0
    %301 = vmatpush1.msra.mxu0 %v268
    %302 = vmatprep.subr.mxu0 0.0
    %303 = vmatpush1.msra.mxu0 %v269
    %304 = vmatprep.subr.mxu0 0.0
    %305 = vmatpush1.msra.mxu0 %v270
    %306 = vmatprep.subr.mxu0 0.0
    %307 = vmatpush1.msra.mxu0 %v271
    %308 = vmatprep.subr.mxu0 0.0
    %309 = vmatpush1.msra.mxu0 %v272
    %310 = vmatprep.subr.mxu0 0.0
    %311 = vmatpush1.msra.mxu0 %v273
    %312 = vmatprep.subr.mxu0 0.0
    %313 = vmatpush1.msra.mxu0 %v274
    %314 = vmatprep.subr.mxu0 0.0
    %315 = vmatpush1.msra.mxu0 0.0
    %316 = vmatprep.subr.mxu0 0.0
    %317 = vmatpush1.msra.mxu0 0.0
    %318 = vmatprep.subr.mxu0 0.0
    %319 = vmatpush1.msra.mxu0 0.0
    %320 = vmatprep.subr.mxu0 0.0
    %321 = vmatpush1.msra.mxu0 0.0
    %322 = vmatprep.subr.mxu0 0.0
    %323 = vmatpush1.msra.mxu0 0.0
    %324 = vmatprep.subr.mxu0 0.0
    %325 = vmatpush1.msra.mxu0 0.0
    %326 = vmatprep.subr.mxu0 0.0
    %327 = vmatpush1.msra.mxu0 0.0
    %328 = vmatprep.subr.mxu0 0.0
    %329 = vmatpush1.msra.mxu0 0.0
    %330 = vmatprep.subr.mxu0 0.0
    %331 = vmatpush1.msra.mxu0 0.0
    %332 = vmatprep.subr.mxu0 0.0
    %333 = vmatpush1.msra.mxu0 0.0
    %334 = vmatprep.subr.mxu0 0.0
    %335 = vmatpush1.msra.mxu0 0.0
    %336 = vmatprep.subr.mxu0 0.0
    %337 = vmatpush1.msra.mxu0 0.0
    %338 = vmatprep.subr.mxu0 0.0
    %339 = vmatpush1.msra.mxu0 0.0
    %340 = vmatprep.subr.mxu0 0.0
    %341 = vmatpush1.msra.mxu0 0.0
    %342 = vmatprep.subr.mxu0 0.0
    %343 = vmatpush1.msra.mxu0 0.0
    %344 = vmatprep.subr.mxu0 0.0
    %345 = vmatpush1.msra.mxu0 0.0
    %346 = vmatprep.mubr.f32.mxu0 0.0
    %347 = vmatmul.mubr.f32.gmra.mrb[0].mxu0 %v243
    %v348 = vpop.f32.mrb[0].mxu0
    %v349 = vadd.f32 %v280, %v348
    %v350 = vpop.f32.mrb[0].mxu0
    %351 = vmatprep.mubr.f32.mxu0 0.0
    %352 = vmatmul.mubr.f32.gmra.mrb[0].mxu0 %v244
    %v353 = vpop.f32.mrb[0].mxu0
    %v354 = vadd.f32 %v280, %v353
    %v355 = vpop.f32.mrb[0].mxu0
    %356 = vmatprep.mubr.f32.mxu0 0.0
    %357 = vmatmul.mubr.f32.gmra.mrb[0].mxu0 %v245
    %v358 = vpop.f32.mrb[0].mxu0
    %v359 = vadd.f32 %v280, %v358
    %v360 = vpop.f32.mrb[0].mxu0
    %361 = vmatprep.mubr.f32.mxu0 0.0
    %362 = vmatmul.mubr.f32.gmra.mrb[0].mxu0 %v246
    %v363 = vpop.f32.mrb[0].mxu0
    %v364 = vadd.f32 %v280, %v363
    %v365 = vpop.f32.mrb[0].mxu0
    %366 = vmatprep.mubr.f32.mxu0 0.0
    %367 = vmatmul.mubr.f32.gmra.mrb[0].mxu0 %v247
    %v368 = vpop.f32.mrb[0].mxu0
    %v369 = vadd.f32 %v280, %v368
    %v370 = vpop.f32.mrb[0].mxu0
    %371 = vmatprep.mubr.f32.mxu0 0.0
    %372 = vmatmul.mubr.f32.gmra.mrb[0].mxu0 %v248
    %v373 = vpop.f32.mrb[0].mxu0
    %v374 = vadd.f32 %v280, %v373
    %v375 = vpop.f32.mrb[0].mxu0
    %376 = vmatprep.mubr.f32.mxu0 0.0
    %377 = vmatmul.mubr.f32.gmra.mrb[0].mxu0 %v249
    %v378 = vpop.f32.mrb[0].mxu0
    %v379 = vadd.f32 %v280, %v378
    %v380 = vpop.f32.mrb[0].mxu0
    %381 = vmatprep.mubr.f32.mxu0 0.0
    %382 = vmatmul.mubr.f32.gmra.mrb[0].mxu0 %v250
    %v383 = vpop.f32.mrb[0].mxu0
    %v384 = vadd.f32 %v280, %v383
    %v385 = vpop.f32.mrb[0].mxu0
    %386 = vmatprep.mubr.f32.mxu0 0.0
    %387 = vmatmul.mubr.f32.gmra.mrb[0].mxu0 %v251
    %v388 = vpop.f32.mrb[0].mxu0
    %v389 = vadd.f32 %v280, %v388
    %v390 = vpop.f32.mrb[0].mxu0
    %391 = vmatprep.mubr.f32.mxu0 0.0
    %392 = vmatmul.mubr.f32.gmra.mrb[0].mxu0 %v252
    %v393 = vpop.f32.mrb[0].mxu0
    %v394 = vadd.f32 %v280, %v393
    %v395 = vpop.f32.mrb[0].mxu0
    %396 = vmatprep.mubr.f32.mxu0 0.0
    %397 = vmatmul.mubr.f32.gmra.mrb[0].mxu0 %v253
    %v398 = vpop.f32.mrb[0].mxu0
    %v399 = vadd.f32 %v280, %v398
    %v400 = vpop.f32.mrb[0].mxu0
    %401 = vmatprep.mubr.f32.mxu0 0.0
    %402 = vmatmul.mubr.f32.gmra.mrb[0].mxu0 %v254
    %v403 = vpop.f32.mrb[0].mxu0
    %v404 = vadd.f32 %v280, %v403
    %v405 = vpop.f32.mrb[0].mxu0
    %406 = vmatprep.mubr.f32.mxu0 0.0
    %407 = vmatmul.mubr.f32.gmra.mrb[0].mxu0 %v255
    %v408 = vpop.f32.mrb[0].mxu0
    %v409 = vadd.f32 %v280, %v408
    %v410 = vpop.f32.mrb[0].mxu0
    %411 = vmatprep.mubr.f32.mxu0 0.0
    %412 = vmatmul.mubr.f32.gmra.mrb[0].mxu0 %v256
    %v413 = vpop.f32.mrb[0].mxu0
    %v414 = vadd.f32 %v280, %v413
    %v415 = vpop.f32.mrb[0].mxu0
    %416 = vmatprep.mubr.f32.mxu0 0.0
    %417 = vmatmul.mubr.f32.gmra.mrb[0].mxu0 %v257
    %v418 = vpop.f32.mrb[0].mxu0
    %v419 = vadd.f32 %v280, %v418
    %v420 = vpop.f32.mrb[0].mxu0
    %421 = vmatprep.mubr.f32.mxu0 0.0
    %422 = vmatmul.mubr.f32.gmra.mrb[0].mxu0 %v258
    %v423 = vpop.f32.mrb[0].mxu0
    %v424 = vadd.f32 %v280, %v423
    %v425 = vpop.f32.mrb[0].mxu0
    %426 = vdwg.mxu0
    %v427 = vlaneseq
    %v428 = vand.u32 %v427, 127
    %vm429 = vcmp.lt.s32.totalorder %v428, 8
    %v430 = vsel %vm429, %v349, -inf
    %v431 = vsel %vm429, %v354, -inf
    %v432 = vsel %vm429, %v359, -inf
    %v433 = vsel %vm429, %v364, -inf
    %v434 = vsel %vm429, %v369, -inf
    %v435 = vsel %vm429, %v374, -inf
    %v436 = vsel %vm429, %v379, -inf
    %v437 = vsel %vm429, %v384, -inf
    %v438 = vsel %vm429, %v389, -inf
    %v439 = vsel %vm429, %v394, -inf
    %v440 = vsel %vm429, %v399, -inf
    %v441 = vsel %vm429, %v404, -inf
    %v442 = vsel %vm429, %v409, -inf
    %v443 = vsel %vm429, %v414, -inf
    %v444 = vsel %vm429, %v419, -inf
    %v445 = vsel %vm429, %v424, -inf
    %446 = vmax.xlane.f32.xlu0 %v430
    %v447 = vpop.xlane.xlu0 %446
    %448 = vmax.xlane.f32.xlu0 %v431
    %v449 = vpop.xlane.xlu0 %448
    %450 = vmax.xlane.f32.xlu0 %v432
    %v451 = vpop.xlane.xlu0 %450
    %452 = vmax.xlane.f32.xlu0 %v433
    %v453 = vpop.xlane.xlu0 %452
    %454 = vmax.xlane.f32.xlu0 %v434
    %v455 = vpop.xlane.xlu0 %454
    %456 = vmax.xlane.f32.xlu0 %v435
    %v457 = vpop.xlane.xlu0 %456
    %458 = vmax.xlane.f32.xlu0 %v436
    %v459 = vpop.xlane.xlu0 %458
    %460 = vmax.xlane.f32.xlu0 %v437
    %v461 = vpop.xlane.xlu0 %460
    %462 = vmax.xlane.f32.xlu0 %v438
    %v463 = vpop.xlane.xlu0 %462
    %464 = vmax.xlane.f32.xlu0 %v439
    %v465 = vpop.xlane.xlu0 %464
    %466 = vmax.xlane.f32.xlu0 %v440
    %v467 = vpop.xlane.xlu0 %466
    %468 = vmax.xlane.f32.xlu0 %v441
    %v469 = vpop.xlane.xlu0 %468
    %470 = vmax.xlane.f32.xlu0 %v442
    %v471 = vpop.xlane.xlu0 %470
    %472 = vmax.xlane.f32.xlu0 %v443
    %v473 = vpop.xlane.xlu0 %472
    %474 = vmax.xlane.f32.xlu0 %v444
    %v475 = vpop.xlane.xlu0 %474
    %476 = vmax.xlane.f32.xlu0 %v445
    %v477 = vpop.xlane.xlu0 %476
    %v478 = vsub.f32 %v430, %v447
    %v479 = vsub.f32 %v431, %v449
    %v480 = vsub.f32 %v432, %v451
    %v481 = vsub.f32 %v433, %v453
    %v482 = vsub.f32 %v434, %v455
    %v483 = vsub.f32 %v435, %v457
    %v484 = vsub.f32 %v436, %v459
    %v485 = vsub.f32 %v437, %v461
    %v486 = vsub.f32 %v438, %v463
    %v487 = vsub.f32 %v439, %v465
    %v488 = vsub.f32 %v440, %v467
    %v489 = vsub.f32 %v441, %v469
    %v490 = vsub.f32 %v442, %v471
    %v491 = vsub.f32 %v443, %v473
    %v492 = vsub.f32 %v444, %v475
    %v493 = vsub.f32 %v445, %v477
    %v494 = vmul.f32 %v478, 1.442695
    %v495 = vpow.pop %v494
    %v496 = vmul.f32 %v479, 1.442695
    %v497 = vpow.pop %v496
    %v498 = vmul.f32 %v480, 1.442695
    %v499 = vpow.pop %v498
    %v500 = vmul.f32 %v481, 1.442695
    %v501 = vpow.pop %v500
    %v502 = vmul.f32 %v482, 1.442695
    %v503 = vpow.pop %v502
    %v504 = vmul.f32 %v483, 1.442695
    %v505 = vpow.pop %v504
    %v506 = vmul.f32 %v484, 1.442695
    %v507 = vpow.pop %v506
    %v508 = vmul.f32 %v485, 1.442695
    %v509 = vpow.pop %v508
    %v510 = vmul.f32 %v486, 1.442695
    %v511 = vpow.pop %v510
    %v512 = vmul.f32 %v487, 1.442695
    %v513 = vpow.pop %v512
    %v514 = vmul.f32 %v488, 1.442695
    %v515 = vpow.pop %v514
    %v516 = vmul.f32 %v489, 1.442695
    %v517 = vpow.pop %v516
    %v518 = vmul.f32 %v490, 1.442695
    %v519 = vpow.pop %v518
    %v520 = vmul.f32 %v491, 1.442695
    %v521 = vpow.pop %v520
    %v522 = vmul.f32 %v492, 1.442695
    %v523 = vpow.pop %v522
    %v524 = vmul.f32 %v493, 1.442695
    %v525 = vpow.pop %v524
    %526 = vadd.xlane.f32.xlu0 %v495
    %v527 = vpop.xlane.xlu0 %526
    %528 = vadd.xlane.f32.xlu0 %v497
    %v529 = vpop.xlane.xlu0 %528
    %530 = vadd.xlane.f32.xlu0 %v499
    %v531 = vpop.xlane.xlu0 %530
    %532 = vadd.xlane.f32.xlu0 %v501
    %v533 = vpop.xlane.xlu0 %532
    %534 = vadd.xlane.f32.xlu0 %v503
    %v535 = vpop.xlane.xlu0 %534
    %536 = vadd.xlane.f32.xlu0 %v505
    %v537 = vpop.xlane.xlu0 %536
    %538 = vadd.xlane.f32.xlu0 %v507
    %v539 = vpop.xlane.xlu0 %538
    %540 = vadd.xlane.f32.xlu0 %v509
    %v541 = vpop.xlane.xlu0 %540
    %542 = vadd.xlane.f32.xlu0 %v511
    %v543 = vpop.xlane.xlu0 %542
    %544 = vadd.xlane.f32.xlu0 %v513
    %v545 = vpop.xlane.xlu0 %544
    %546 = vadd.xlane.f32.xlu0 %v515
    %v547 = vpop.xlane.xlu0 %546
    %548 = vadd.xlane.f32.xlu0 %v517
    %v549 = vpop.xlane.xlu0 %548
    %550 = vadd.xlane.f32.xlu0 %v519
    %v551 = vpop.xlane.xlu0 %550
    %552 = vadd.xlane.f32.xlu0 %v521
    %v553 = vpop.xlane.xlu0 %552
    %554 = vadd.xlane.f32.xlu0 %v523
    %v555 = vpop.xlane.xlu0 %554
    %556 = vadd.xlane.f32.xlu0 %v525
    %v557 = vpop.xlane.xlu0 %556
    %v558 = vrcp.pop %v527
    %v559 = vrcp.pop %v529
    %v560 = vrcp.pop %v531
    %v561 = vrcp.pop %v533
    %v562 = vrcp.pop %v535
    %v563 = vrcp.pop %v537
    %v564 = vrcp.pop %v539
    %v565 = vrcp.pop %v541
    %v566 = vrcp.pop %v543
    %v567 = vrcp.pop %v545
    %v568 = vrcp.pop %v547
    %v569 = vrcp.pop %v549
    %v570 = vrcp.pop %v551
    %v571 = vrcp.pop %v553
    %v572 = vrcp.pop %v555
    %v573 = vrcp.pop %v557
    %v574 = vmul.f32 %v527, %v558
    %v575 = vmul.f32 %v529, %v559
    %v576 = vmul.f32 %v531, %v560
    %v577 = vmul.f32 %v533, %v561
    %v578 = vmul.f32 %v535, %v562
    %v579 = vmul.f32 %v537, %v563
    %v580 = vmul.f32 %v539, %v564
    %v581 = vmul.f32 %v541, %v565
    %v582 = vmul.f32 %v543, %v566
    %v583 = vmul.f32 %v545, %v567
    %v584 = vmul.f32 %v547, %v568
    %v585 = vmul.f32 %v549, %v569
    %v586 = vmul.f32 %v551, %v570
    %v587 = vmul.f32 %v553, %v571
    %v588 = vmul.f32 %v555, %v572
    %v589 = vmul.f32 %v557, %v573
    %v590 = vsub.f32 2.0, %v574
    %v591 = vsub.f32 2.0, %v575
    %v592 = vsub.f32 2.0, %v576
    %v593 = vsub.f32 2.0, %v577
    %v594 = vsub.f32 2.0, %v578
    %v595 = vsub.f32 2.0, %v579
    %v596 = vsub.f32 2.0, %v580
    %v597 = vsub.f32 2.0, %v581
    %v598 = vsub.f32 2.0, %v582
    %v599 = vsub.f32 2.0, %v583
    %v600 = vsub.f32 2.0, %v584
    %v601 = vsub.f32 2.0, %v585
    %v602 = vsub.f32 2.0, %v586
    %v603 = vsub.f32 2.0, %v587
    %v604 = vsub.f32 2.0, %v588
    %v605 = vsub.f32 2.0, %v589
    %v606 = vmul.f32 %v558, %v590
    %v607 = vmul.f32 %v559, %v591
    %v608 = vmul.f32 %v560, %v592
    %v609 = vmul.f32 %v561, %v593
    %v610 = vmul.f32 %v562, %v594
    %v611 = vmul.f32 %v563, %v595
    %v612 = vmul.f32 %v564, %v596
    %v613 = vmul.f32 %v565, %v597
    %v614 = vmul.f32 %v566, %v598
    %v615 = vmul.f32 %v567, %v599
    %v616 = vmul.f32 %v568, %v600
    %v617 = vmul.f32 %v569, %v601
    %v618 = vmul.f32 %v570, %v602
    %v619 = vmul.f32 %v571, %v603
    %v620 = vmul.f32 %v572, %v604
    %v621 = vmul.f32 %v573, %v605
    %v622 = vmul.f32 %v495, %v606
    %v623 = vmul.f32 %v497, %v607
    %v624 = vmul.f32 %v499, %v608
    %v625 = vmul.f32 %v501, %v609
    %v626 = vmul.f32 %v503, %v610
    %v627 = vmul.f32 %v505, %v611
    %v628 = vmul.f32 %v507, %v612
    %v629 = vmul.f32 %v509, %v613
    %v630 = vmul.f32 %v511, %v614
    %v631 = vmul.f32 %v513, %v615
    %v632 = vmul.f32 %v515, %v616
    %v633 = vmul.f32 %v517, %v617
    %v634 = vmul.f32 %v519, %v618
    %v635 = vmul.f32 %v521, %v619
    %v636 = vmul.f32 %v523, %v620
    %v637 = vmul.f32 %v525, %v621
    %638 = vst [vmem:[#allocation2] sm:$0xff] %v622
    %639 = vst [vmem:[#allocation2 + $0x8] sm:$0xff] %v623
    %640 = vst [vmem:[#allocation2 + $0x10] sm:$0xff] %v624
    %641 = vst [vmem:[#allocation2 + $0x18] sm:$0xff] %v625
    %642 = vst [vmem:[#allocation2 + $0x20] sm:$0xff] %v626
    %643 = vst [vmem:[#allocation2 + $0x28] sm:$0xff] %v627
    %644 = vst [vmem:[#allocation2 + $0x30] sm:$0xff] %v628
    %645 = vst [vmem:[#allocation2 + $0x38] sm:$0xff] %v629
    %646 = vst [vmem:[#allocation2 + $0x40] sm:$0xff] %v630
    %647 = vst [vmem:[#allocation2 + $0x48] sm:$0xff] %v631
    %648 = vst [vmem:[#allocation2 + $0x50] sm:$0xff] %v632
    %649 = vst [vmem:[#allocation2 + $0x58] sm:$0xff] %v633
    %650 = vst [vmem:[#allocation2 + $0x60] sm:$0xff] %v634
    %651 = vst [vmem:[#allocation2 + $0x68] sm:$0xff] %v635
    %652 = vst [vmem:[#allocation2 + $0x70] sm:$0xff] %v636
    %653 = vst [vmem:[#allocation2 + $0x78] sm:$0xff] %v637
    // Predicated region
    $region22: #{tpu_custom_call.1} parent=1 // pred_check
      _
    $region23: #{tpu_custom_call.1} parent=1 // pred_check_branch
      %655 = sbr.rel (0) target = $region25
    $region24: #{tpu_custom_call.1} parent=1 // pred_region
      %s657 = ssub.s32 2048, 2048
      %658 = vsyncadd [#allocation3], %s657
      %s659 = sshll.u32 [#allocation2], 4
      %s660 = int_to_ptr.vmem [resolvable:$true] %s659
      %665 = dma.vmem_to_hbm [thread:$0]  %s660, 2048, %s5, [#allocation3], 128, 128, 8
    $region25: #{tpu_custom_call.1} parent=1 // pred_fallthru
      _
    // Predicated region
    $region26: #{tpu_custom_call.1} parent=1 // pred_check
      _
    $region27: #{tpu_custom_call.1} parent=1 // pred_check_branch
      %667 = sbr.rel (0) target = $region29
    $region28: #{tpu_custom_call.1} parent=1 // pred_region
      %668 = dma.done [#allocation3], 2048
    $region29: #{tpu_custom_call.1} parent=1 // pred_fallthru
      _
    %669 = vsyncpa [#allocation3], 1

</llo_original>
